<compile_context>
chip_gen: v5e
topology: v5e:2x2
jax: 0.10.0
libtpu: 0.0.40
codegen_flags: <defaults>
</compile_context>

<pallas_src>
import jax
import jax.numpy as jnp
from jax.experimental import pallas as pl
from jax.experimental.pallas import tpu as pltpu


def _decoder_kernel(p_ref, w1_ref, b1_ref, w2_ref, b2_ref, o_ref):
    """One (batch-block, spatial-tile) per grid step.

    p_ref : (B, TM, K)   bf16 im2col patches (K = 9*Cin), built in the wrapper
    w1_ref: (K, P)       bf16 3x3 conv weights with BN scale folded in
    b1_ref: (1, P)       f32 fused (conv-bias + BN) bias
    w2_ref: (CP, P)      bf16 1x1 conv weights, transposed + sublane-padded out channels
    b2_ref: (CP, 1)      f32 1x1 conv bias (padded)
    o_ref : (B, CP, TM)  f32 NCHW-flat output slab (lane axis = spatial, already lane-dense)
    """
    B, TM, K = p_ref.shape
    patches = p_ref[...].reshape(B * TM, K)

    # 3x3 conv (BN scale folded into the weights) + fused bias + ReLU.
    h = jnp.dot(patches, w1_ref[...], preferred_element_type=jnp.float32)
    h = jnp.maximum(h + b1_ref[...], 0.0).astype(jnp.bfloat16)

    # (bilinear resize to the tensor's own spatial size == identity, skipped)

    # 1x1 conv emitted transposed: (CP, P) x (B*TM, P)^T -> (CP, B*TM); output is NCHW-flat.
    out = jax.lax.dot_general(
        w2_ref[...], h,
        dimension_numbers=(((1,), (1,)), ((), ())),
        preferred_element_type=jnp.float32) + b2_ref[...]

    for b in range(B):  # static unroll; lane slices are TM-aligned
        o_ref[b] = out[:, b * TM:(b + 1) * TM].astype(o_ref.dtype)


@jax.jit
def decoder2d_forward(x_nchw, w1_oihw, b1, gamma, beta, run_mean, run_var,
                      w2_oihw, b2, eps=1e-5):
    """Pallas implementation of Decoder2D.forward. Input/output are NCHW (PyTorch convention)."""
    N, Cin, H, W = x_nchw.shape
    P = w1_oihw.shape[0]
    Cout = w2_oihw.shape[0]
    HW = H * W
    K = 9 * Cin
    CP = ((Cout + 7) // 8) * 8            # sublane-pad output channels (11 -> 16)

    # ---- wrapper-side im2col (keeps the relayout work out of the kernel) ----
    x_nhwc = jnp.transpose(x_nchw, (0, 2, 3, 1))
    x_pad = jnp.pad(x_nhwc, ((0, 0), (1, 1), (1, 1), (0, 0)))
    patches = jnp.concatenate(
        [x_pad[:, dy:dy + H, dx:dx + W, :].reshape(N, HW, Cin)
         for dy in range(3) for dx in range(3)],
        axis=-1).astype(jnp.bfloat16)                            # (N, HW, K), (dy, dx, cin) order

    # ---- fold eval-mode BN scale into the 3x3 weights; flatten to match patch ordering ----
    s = gamma / jnp.sqrt(run_var + eps)                           # (P,)
    w1_hwio = jnp.transpose(w1_oihw, (2, 3, 1, 0))                # (3,3,Cin,P)
    w1_flat = (w1_hwio * s).reshape(K, P).astype(jnp.bfloat16)
    b1_fused = ((b1 - run_mean) * s + beta).reshape(1, P).astype(jnp.float32)

    # ---- 1x1 conv weights transposed to (CP, P) so the kernel writes NCHW-flat slabs ----
    w2_oi = w2_oihw.reshape(Cout, P)
    w2_p = jnp.zeros((CP, P), jnp.bfloat16).at[:Cout, :].set(w2_oi.astype(jnp.bfloat16))
    b2_p = jnp.zeros((CP, 1), jnp.float32).at[:Cout, 0].set(b2.astype(jnp.float32))

    # ---- blocking: batch block B, spatial tile TM (bounds VMEM; feeds both v7x TCs) ----
    B = 1 if N <= 2 else min(4, N)        # keep >=2 grid steps for small N; amortize when large
    TM = HW if HW <= 1024 else 1024       # spatial tile (full HW or a 128-multiple chunk)
    Np = pl.cdiv(N, B) * B
    HWp = pl.cdiv(HW, TM) * TM
    if Np != N or HWp != HW:
        patches = jnp.pad(patches, ((0, Np - N), (0, HWp - HW), (0, 0)))

    grid = (Np // B, HWp // TM)

    flops = 2 * Np * HWp * (K * P + P * CP)
    bytes_accessed = (2 * (Np * HWp * K + K * P + CP * P)         # bf16 operands
                      + 4 * (P + CP + Np * CP * HWp))             # f32 biases + output

    out_flat = pl.pallas_call(
        _decoder_kernel,
        out_shape=jax.ShapeDtypeStruct((Np, CP, HWp), jnp.float32),
        grid_spec=pltpu.PrefetchScalarGridSpec(
            num_scalar_prefetch=0,
            grid=grid,
            in_specs=[
                pl.BlockSpec((B, TM, K), lambda n, m: (n, m, 0)),
                pl.BlockSpec((K, P), lambda n, m: (0, 0)),
                pl.BlockSpec((1, P), lambda n, m: (0, 0)),
                pl.BlockSpec((CP, P), lambda n, m: (0, 0)),
                pl.BlockSpec((CP, 1), lambda n, m: (0, 0)),
            ],
            out_specs=pl.BlockSpec((B, CP, TM), lambda n, m: (n, 0, m)),
        ),
        compiler_params=pltpu.CompilerParams(
            dimension_semantics=("parallel", "parallel"),
            vmem_limit_bytes=32 * 1024 * 1024),
        cost_estimate=pl.CostEstimate(
            flops=flops, transcendentals=0, bytes_accessed=bytes_accessed),
    )(patches, w1_flat, b1_fused, w2_p, b2_p)

    # Slice off batch/channel/spatial padding; the slab is already NCHW-flat (no transpose).
    return out_flat[:N, :Cout, :HW].reshape(N, Cout, H, W)


def _reference_forward(x_nchw, w1_oihw, b1, gamma, beta, run_mean, run_var,
                       w2_oihw, b2, eps=1e-5):
    """Pure-JAX f32 reference (same math, no Pallas) for validation."""
    x = jnp.transpose(x_nchw, (0, 2, 3, 1))                      # NHWC
    w1 = jnp.transpose(w1_oihw, (2, 3, 1, 0))                    # HWIO
    y = jax.lax.conv_general_dilated(
        x, w1, window_strides=(1, 1), padding="SAME",
        dimension_numbers=("NHWC", "HWIO", "NHWC"),
        precision=jax.lax.Precision.HIGHEST) + b1
    y = (y - run_mean) / jnp.sqrt(run_var + eps) * gamma + beta
    y = jnp.maximum(y, 0.0)
    Cout, P = w2_oihw.shape[0], w2_oihw.shape[1]
    w2 = jnp.transpose(w2_oihw.reshape(Cout, P), (1, 0))
    y = jnp.einsum("nhwp,pc->nhwc", y, w2,
                   precision=jax.lax.Precision.HIGHEST) + b2
    return jnp.transpose(y, (0, 3, 1, 2))


if __name__ == "__main__":
    # Small shapes consistent with Decoder2D(size, in_channels=4, out_channels=11, planes=64).
    N, Cin, H, W = 2, 4, 16, 16
    P, Cout = 64, 11

    key = jax.random.PRNGKey(0)
    ks = jax.random.split(key, 8)
    x = jax.random.normal(ks[0], (N, Cin, H, W), jnp.float32)

    w1 = jax.random.normal(ks[1], (P, Cin, 3, 3), jnp.float32) * 0.1   # OIHW
    b1 = jax.random.normal(ks[2], (P,), jnp.float32) * 0.1
    gamma = 1.0 + 0.1 * jax.random.normal(ks[3], (P,), jnp.float32)
    beta = 0.1 * jax.random.normal(ks[4], (P,), jnp.float32)
    run_mean = jnp.zeros((P,), jnp.float32)                            # PyTorch default init
    run_var = jnp.ones((P,), jnp.float32)
    w2 = jax.random.normal(ks[5], (Cout, P, 1, 1), jnp.float32) * 0.1  # OIHW
    b2 = jax.random.normal(ks[6], (Cout,), jnp.float32) * 0.1

    out = decoder2d_forward(x, w1, b1, gamma, beta, run_mean, run_var, w2, b2)
    out = jax.block_until_ready(out)

    ref = _reference_forward(x, w1, b1, gamma, beta, run_mean, run_var, w2, b2)
    assert out.shape == (N, Cout, H, W), out.shape
    # Kernel matmul operands are explicitly bf16 (f32 accumulation); compare against the
    # f32-HIGHEST reference with a correspondingly relaxed tolerance.
    assert jnp.allclose(out, ref, rtol=3e-2, atol=3e-2), float(jnp.max(jnp.abs(out - ref)))

    print("KERNEL_OK")
</pallas_src>

<mosaic_0001>
module attributes {stable_mosaic.version = 11 : i64} {
  func.func @_decoder_kernel(%arg0: i32, %arg1: i32, %arg2: memref<1x256x36xbf16, #tpu.memory_space<vmem>>, %arg3: memref<36x64xbf16, #tpu.memory_space<vmem>>, %arg4: memref<1x64xf32, #tpu.memory_space<vmem>>, %arg5: memref<16x64xbf16, #tpu.memory_space<vmem>>, %arg6: memref<16x1xf32, #tpu.memory_space<vmem>>, %arg7: memref<1x16x256xf32, #tpu.memory_space<vmem>>) attributes {dimension_semantics = [#tpu.dimension_semantics<parallel>, #tpu.dimension_semantics<parallel>], iteration_bounds = array<i64: 2, 1>, scalar_prefetch = 0 : i64, scratch_operands = 0 : i64, tpu.core_type = #tpu.core_type<tc>, window_params = [{transform_indices = @transform_0, window_bounds = array<i64: 1, 256, 36>}, {pipeline_mode = #tpu.pipeline_mode<synchronous>, transform_indices = @transform_1, window_bounds = array<i64: 36, 64>}, {pipeline_mode = #tpu.pipeline_mode<synchronous>, transform_indices = @transform_2, window_bounds = array<i64: 1, 64>}, {pipeline_mode = #tpu.pipeline_mode<synchronous>, transform_indices = @transform_3, window_bounds = array<i64: 16, 64>}, {pipeline_mode = #tpu.pipeline_mode<synchronous>, transform_indices = @transform_4, window_bounds = array<i64: 16, 1>}, {transform_indices = @transform_5, window_bounds = array<i64: 1, 16, 256>}]} {
    %c0 = arith.constant 0 : index
    %c0_0 = arith.constant 0 : index
    %c0_1 = arith.constant 0 : index
    %0 = vector.load %arg2[%c0, %c0_0, %c0_1] : memref<1x256x36xbf16, #tpu.memory_space<vmem>>, vector<1x256x36xbf16>
    %1 = vector.shape_cast %0 : vector<1x256x36xbf16> to vector<256x36xbf16>
    %c0_2 = arith.constant 0 : index
    %c0_3 = arith.constant 0 : index
    %2 = vector.load %arg3[%c0_2, %c0_3] : memref<36x64xbf16, #tpu.memory_space<vmem>>, vector<36x64xbf16>
    %cst = arith.constant dense<0.000000e+00> : vector<256x64xf32>
    %3 = tpu.matmul %1, %2, %cst {dimension_numbers = #tpu.dot_dimension_numbers<[1], [0], [0], [1], [0, 0, 1, 1], [], []>} : vector<256x36xbf16>, vector<36x64xbf16>, vector<256x64xf32> -> vector<256x64xf32>
    %c0_4 = arith.constant 0 : index
    %c0_5 = arith.constant 0 : index
    %4 = vector.load %arg4[%c0_4, %c0_5] : memref<1x64xf32, #tpu.memory_space<vmem>>, vector<1x64xf32>
    %5 = vector.broadcast %4 : vector<1x64xf32> to vector<256x64xf32>
    %6 = arith.addf %3, %5 : vector<256x64xf32>
    %cst_6 = arith.constant 0.000000e+00 : f32
    %7 = vector.broadcast %cst_6 : f32 to vector<256x64xf32>
    %8 = arith.maximumf %6, %7 : vector<256x64xf32>
    %9 = arith.truncf %8 : vector<256x64xf32> to vector<256x64xbf16>
    %c0_7 = arith.constant 0 : index
    %c0_8 = arith.constant 0 : index
    %10 = vector.load %arg5[%c0_7, %c0_8] : memref<16x64xbf16, #tpu.memory_space<vmem>>, vector<16x64xbf16>
    %cst_9 = arith.constant dense<0.000000e+00> : vector<16x256xf32>
    %11 = tpu.matmul %10, %9, %cst_9 {dimension_numbers = #tpu.dot_dimension_numbers<[1], [1], [0], [0], [0, 0, 1, 0], [], []>} : vector<16x64xbf16>, vector<256x64xbf16>, vector<16x256xf32> -> vector<16x256xf32>
    %c0_10 = arith.constant 0 : index
    %c0_11 = arith.constant 0 : index
    %12 = vector.load %arg6[%c0_10, %c0_11] : memref<16x1xf32, #tpu.memory_space<vmem>>, vector<16x1xf32>
    %13 = vector.broadcast %12 : vector<16x1xf32> to vector<16x256xf32>
    %14 = arith.addf %11, %13 : vector<16x256xf32>
    %c0_12 = arith.constant 0 : index
    %c0_13 = arith.constant 0 : index
    %c0_14 = arith.constant 0 : index
    %15 = vector.load %arg7[%c0_12, %c0_13, %c0_14] : memref<1x16x256xf32, #tpu.memory_space<vmem>>, vector<1x16x256xf32>
    %16 = vector.shape_cast %15 : vector<1x16x256xf32> to vector<16x256xf32>
    %17 = vector.shape_cast %14 : vector<16x256xf32> to vector<1x16x256xf32>
    tpu.vector_store %arg7[%c0_12, %c0_13, %c0_14], %17 {strides = array<i32>} : memref<1x16x256xf32, #tpu.memory_space<vmem>>, vector<1x16x256xf32>,
    return
  }
  func.func @transform_0(%arg0: i32, %arg1: i32) -> (i32, i32, i32) {
    %c0_i32 = arith.constant 0 : i32
    %c0_i32_0 = arith.constant 0 : i32
    return %arg0, %arg1, %c0_i32 : i32, i32, i32
  }
  func.func @transform_1(%arg0: i32, %arg1: i32) -> (i32, i32) {
    %c0_i32 = arith.constant 0 : i32
    %c0_i32_0 = arith.constant 0 : i32
    %c0_i32_1 = arith.constant 0 : i32
    return %c0_i32, %c0_i32_0 : i32, i32
  }
  func.func @transform_2(%arg0: i32, %arg1: i32) -> (i32, i32) {
    %c0_i32 = arith.constant 0 : i32
    %c0_i32_0 = arith.constant 0 : i32
    %c0_i32_1 = arith.constant 0 : i32
    return %c0_i32, %c0_i32_0 : i32, i32
  }
  func.func @transform_3(%arg0: i32, %arg1: i32) -> (i32, i32) {
    %c0_i32 = arith.constant 0 : i32
    %c0_i32_0 = arith.constant 0 : i32
    %c0_i32_1 = arith.constant 0 : i32
    return %c0_i32, %c0_i32_0 : i32, i32
  }
  func.func @transform_4(%arg0: i32, %arg1: i32) -> (i32, i32) {
    %c0_i32 = arith.constant 0 : i32
    %c0_i32_0 = arith.constant 0 : i32
    %c0_i32_1 = arith.constant 0 : i32
    return %c0_i32, %c0_i32_0 : i32, i32
  }
  func.func @transform_5(%arg0: i32, %arg1: i32) -> (i32, i32, i32) {
    %c0_i32 = arith.constant 0 : i32
    %c0_i32_0 = arith.constant 0 : i32
    return %arg0, %c0_i32, %arg1 : i32, i32, i32
  }
}

</mosaic_0001>

<llo_original>
// kernel: decoder2d_forward.1
$region0: #{decoder2d_forward.1}
  #allocation0 [shape = 'u32[]', space=smem, size = 0x4, offset = 0x4, fixed_abs, tag = 'smem constant byte address 0x4 - core index']
  #allocation1 [shape = 'u32[72,128]{1,0:T(1,128)}', space=vmem, size = 0x9000, scoped, tag = 'internal scratch']
  %s0 = inlined_call_operand.vmem [shape: bf16[2,256,36], index: 0, kind: input, shape index: {}]
  %s1 = inlined_call_operand.vmem [shape: bf16[36,64], index: 1, kind: input, shape index: {}]
  %s2 = inlined_call_operand.vmem [shape: f32[1,64], index: 2, kind: input, shape index: {}]
  %s3 = inlined_call_operand.vmem [shape: bf16[16,64], index: 3, kind: input, shape index: {}]
  %s4 = inlined_call_operand.vmem [shape: f32[16,1], index: 4, kind: input, shape index: {}]
  %s5 = inlined_call_operand.vmem [shape: f32[2,16,256], index: 5, kind: output, shape index: {}]
  %s6 = sld [smem:[#allocation0]]
  $region53: #{decoder2d_forward.1} parent=0
    _
  %s8 = ssub.s32 1, %s6
  %s9 = scalar_select 0, %s8, %s6
  loop: start=0, step=1, limit=4
  $region2: #{decoder2d_forward.1} parent=0 // loop_pre_header
    _
  $region3: #{decoder2d_forward.1} parent=0 // loop_header
    %s11 = sphi 0, %s15
    %p12 = scmp.ge.s32.totalorder %s11, 4
    %s18 = sphi 0, %s30
    %s19 = sphi 0, %s26
    %s20 = sphi 0, %s18
    %s21 = sphi 0, %s19
    %s22 = sphi 0, %s20
    %s23 = sphi 0, %s21
    %s35 = sphi 0, %s37
    %s38 = sphi 0, %s35
    %s39 = sphi 0, %s38
    %s55 = sphi 0, %s39
    %s59 = sphi 0, %s59
    %s61 = sphi 0, %s59
    %s62 = sphi 0, %s61
    %s76 = sphi 0, %s62
    %s80 = sphi 0, %s80
    %s82 = sphi 0, %s80
    %s83 = sphi 0, %s82
    %s97 = sphi 0, %s83
    %s101 = sphi 0, %s101
    %s103 = sphi 0, %s101
    %s104 = sphi 0, %s103
    %s118 = sphi 0, %s104
    %s122 = sphi 0, %s122
    %s124 = sphi 0, %s122
    %s125 = sphi 0, %s124
    %s139 = sphi 0, %s125
    %s147 = sphi 0, %s149
    %s150 = sphi 0, %s147
    %s151 = sphi 0, %s150
    %s167 = sphi 0, %s151
  $region4: #{decoder2d_forward.1} parent=0 // loop_header_branch
    %14 = sbr.rel (%p12) target = $region8
  $region5: #{decoder2d_forward.1} parent=0 // loop_body
    %s16 = ssub.s32 %s11, 1
    %s17 = ssub.s32 %s11, 2
    %s24 = sadd.s32 1, %s19
    %p25 = scmp.ge.s32.totalorder %s24, 1
    %s26 = scalar_select %p25, 0, %s24
    %s27 = sadd.s32 1, %s18
    %s28 = scalar_select %p25, %s27, %s18
    %p29 = scmp.ge.s32.totalorder %s28, 2
    %s30 = scalar_select %p29, 0, %s28
    %s31 = ssub.s32 %s18, %s30
    %s32 = ssub.s32 %s19, %s26
    %s33 = sor.u32 %s31, %s32
    %p34 = scmp.eq.s32.totalorder %s33, 0
    %s36 = sadd.s32 %s35, 1
    %s37 = scalar_select %p34, %s35, %s36
    %p40 = pneg %p34
    %p41 = scmp.eq.s32.totalorder %s11, 1
    %p42 = por %p40, %p41
    %p43 = scmp.ne.s32.totalorder %s35, %s38
    %p44 = scmp.eq.s32.totalorder %s11, 0
    %p45 = por %p43, %p44
    %p46 = scmp.ne.s32.totalorder %s35, %s38
    %p47 = scmp.eq.s32.totalorder %s16, 1
    %p48 = por %p46, %p47
    %p49 = scmp.ne.s32.totalorder %s38, %s39
    %p50 = scmp.eq.s32.totalorder %s16, 0
    %p51 = por %p49, %p50
    %p52 = scmp.ne.s32.totalorder %s38, %s39
    %p53 = scmp.eq.s32.totalorder %s17, 1
    %p54 = por %p52, %p53
    %p56 = scmp.ne.s32.totalorder %s39, %s55
    %p57 = scmp.eq.s32.totalorder %s17, 0
    %p58 = por %p56, %p57
    %s60 = sadd.s32 %s59, 1
    %p63 = scmp.eq.s32.totalorder %s11, 1
    %p64 = scmp.ne.s32.totalorder %s59, %s61
    %p65 = scmp.eq.s32.totalorder %s11, 0
    %p66 = por %p64, %p65
    %p67 = scmp.ne.s32.totalorder %s59, %s61
    %p68 = scmp.eq.s32.totalorder %s16, 1
    %p69 = por %p67, %p68
    %p70 = scmp.ne.s32.totalorder %s61, %s62
    %p71 = scmp.eq.s32.totalorder %s16, 0
    %p72 = por %p70, %p71
    %p73 = scmp.ne.s32.totalorder %s61, %s62
    %p74 = scmp.eq.s32.totalorder %s17, 1
    %p75 = por %p73, %p74
    %p77 = scmp.ne.s32.totalorder %s62, %s76
    %p78 = scmp.eq.s32.totalorder %s17, 0
    %p79 = por %p77, %p78
    %s81 = sadd.s32 %s80, 1
    %p84 = scmp.eq.s32.totalorder %s11, 1
    %p85 = scmp.ne.s32.totalorder %s80, %s82
    %p86 = scmp.eq.s32.totalorder %s11, 0
    %p87 = por %p85, %p86
    %p88 = scmp.ne.s32.totalorder %s80, %s82
    %p89 = scmp.eq.s32.totalorder %s16, 1
    %p90 = por %p88, %p89
    %p91 = scmp.ne.s32.totalorder %s82, %s83
    %p92 = scmp.eq.s32.totalorder %s16, 0
    %p93 = por %p91, %p92
    %p94 = scmp.ne.s32.totalorder %s82, %s83
    %p95 = scmp.eq.s32.totalorder %s17, 1
    %p96 = por %p94, %p95
    %p98 = scmp.ne.s32.totalorder %s83, %s97
    %p99 = scmp.eq.s32.totalorder %s17, 0
    %p100 = por %p98, %p99
    %s102 = sadd.s32 %s101, 1
    %p105 = scmp.eq.s32.totalorder %s11, 1
    %p106 = scmp.ne.s32.totalorder %s101, %s103
    %p107 = scmp.eq.s32.totalorder %s11, 0
    %p108 = por %p106, %p107
    %p109 = scmp.ne.s32.totalorder %s101, %s103
    %p110 = scmp.eq.s32.totalorder %s16, 1
    %p111 = por %p109, %p110
    %p112 = scmp.ne.s32.totalorder %s103, %s104
    %p113 = scmp.eq.s32.totalorder %s16, 0
    %p114 = por %p112, %p113
    %p115 = scmp.ne.s32.totalorder %s103, %s104
    %p116 = scmp.eq.s32.totalorder %s17, 1
    %p117 = por %p115, %p116
    %p119 = scmp.ne.s32.totalorder %s104, %s118
    %p120 = scmp.eq.s32.totalorder %s17, 0
    %p121 = por %p119, %p120
    %s123 = sadd.s32 %s122, 1
    %p126 = scmp.eq.s32.totalorder %s11, 1
    %p127 = scmp.ne.s32.totalorder %s122, %s124
    %p128 = scmp.eq.s32.totalorder %s11, 0
    %p129 = por %p127, %p128
    %p130 = scmp.ne.s32.totalorder %s122, %s124
    %p131 = scmp.eq.s32.totalorder %s16, 1
    %p132 = por %p130, %p131
    %p133 = scmp.ne.s32.totalorder %s124, %s125
    %p134 = scmp.eq.s32.totalorder %s16, 0
    %p135 = por %p133, %p134
    %p136 = scmp.ne.s32.totalorder %s124, %s125
    %p137 = scmp.eq.s32.totalorder %s17, 1
    %p138 = por %p136, %p137
    %p140 = scmp.ne.s32.totalorder %s125, %s139
    %p141 = scmp.eq.s32.totalorder %s17, 0
    %p142 = por %p140, %p141
    %s143 = ssub.s32 %s18, %s30
    %s144 = ssub.s32 %s19, %s26
    %s145 = sor.u32 %s143, %s144
    %p146 = scmp.eq.s32.totalorder %s145, 0
    %s148 = sadd.s32 %s147, 1
    %s149 = scalar_select %p146, %s147, %s148
    %p152 = pneg %p146
    %p153 = scmp.eq.s32.totalorder %s11, 1
    %p154 = por %p152, %p153
    %p155 = scmp.ne.s32.totalorder %s147, %s150
    %p156 = scmp.eq.s32.totalorder %s11, 0
    %p157 = por %p155, %p156
    %p158 = scmp.ne.s32.totalorder %s147, %s150
    %p159 = scmp.eq.s32.totalorder %s16, 1
    %p160 = por %p158, %p159
    %p161 = scmp.ne.s32.totalorder %s150, %s151
    %p162 = scmp.eq.s32.totalorder %s16, 0
    %p163 = por %p161, %p162
    %p164 = scmp.ne.s32.totalorder %s150, %s151
    %p165 = scmp.eq.s32.totalorder %s17, 1
    %p166 = por %p164, %p165
    %p168 = scmp.ne.s32.totalorder %s151, %s167
    %p169 = scmp.eq.s32.totalorder %s17, 0
    %p170 = por %p168, %p169
    %p171 = scmp.le.s32.totalorder 1, %s11
    %p172 = scmp.lt.s32.totalorder %s11, 3
    %p173 = pnand %p171, %p172
    %p174 = pneg %p173
    // Predicated region
    $region9: #{decoder2d_forward.1} parent=5 // pred_check
      _
    $region10: #{decoder2d_forward.1} parent=5 // pred_check_branch
      %176 = sbr.rel (%p173) target = $region12
    $region11: #{decoder2d_forward.1} parent=5 // pred_region
      %s177 = ssub.s32 %s11, 1
      // Predicated region
      $region13: #{decoder2d_forward.1} parent=11 // pred_check
        %p178 = pneg %p72
      $region14: #{decoder2d_forward.1} parent=11 // pred_check_branch
        %180 = sbr.rel (%p178) target = $region16
      $region15: #{decoder2d_forward.1} parent=11 // pred_region
        _
      $region16: #{decoder2d_forward.1} parent=11 // pred_fallthru
        _
      // Predicated region
      $region17: #{decoder2d_forward.1} parent=11 // pred_check
        %p181 = pneg %p93
      $region18: #{decoder2d_forward.1} parent=11 // pred_check_branch
        %183 = sbr.rel (%p181) target = $region20
      $region19: #{decoder2d_forward.1} parent=11 // pred_region
        _
      $region20: #{decoder2d_forward.1} parent=11 // pred_fallthru
        _
      // Predicated region
      $region21: #{decoder2d_forward.1} parent=11 // pred_check
        %p184 = pneg %p114
      $region22: #{decoder2d_forward.1} parent=11 // pred_check_branch
        %186 = sbr.rel (%p184) target = $region24
      $region23: #{decoder2d_forward.1} parent=11 // pred_region
        _
      $region24: #{decoder2d_forward.1} parent=11 // pred_fallthru
        _
      // Predicated region
      $region25: #{decoder2d_forward.1} parent=11 // pred_check
        %p187 = pneg %p135
      $region26: #{decoder2d_forward.1} parent=11 // pred_check_branch
        %189 = sbr.rel (%p187) target = $region28
      $region27: #{decoder2d_forward.1} parent=11 // pred_region
        _
      $region28: #{decoder2d_forward.1} parent=11 // pred_fallthru
        _
    $region12: #{decoder2d_forward.1} parent=5 // pred_fallthru
      _
    %p190 = scmp.lt.s32.totalorder %s11, 2
    // Predicated region
    $region29: #{decoder2d_forward.1} parent=5 // pred_check
      %p191 = pneg %p190
    $region30: #{decoder2d_forward.1} parent=5 // pred_check_branch
      %193 = sbr.rel (%p191) target = $region32
    $region31: #{decoder2d_forward.1} parent=5 // pred_region
      // Predicated region
      $region33: #{decoder2d_forward.1} parent=31 // pred_check
        %p194 = pneg %p45
      $region34: #{decoder2d_forward.1} parent=31 // pred_check_branch
        %196 = sbr.rel (%p194) target = $region36
      $region35: #{decoder2d_forward.1} parent=31 // pred_region
        %s197 = smul.u32 32, %s19
        %p198 = scmp.lt.s32.totalorder %s18, 1
        %s199 = scalar_select %p198, %s18, 1
        %p200 = scmp.lt.s32.totalorder %s197, 31
        %s201 = scalar_select %p200, %s197, 31
        %s202 = smul.addr %s199, 32
        %s203 = sadd.s32 %s201, %s202
        %s204 = smul.addr %s203, 4
        %s205 = scalar_lea.vmem %s0, %s204
        %s206 = smul.u32 32, %s19
      $region36: #{decoder2d_forward.1} parent=31 // pred_fallthru
        _
    $region32: #{decoder2d_forward.1} parent=5 // pred_fallthru
      _
    %p207 = scmp.le.s32.totalorder 1, %s11
    %p208 = scmp.lt.s32.totalorder %s11, 3
    %p209 = pnand %p207, %p208
    %p210 = pneg %p209
    // Predicated region
    $region37: #{decoder2d_forward.1} parent=5 // pred_check
      _
    $region38: #{decoder2d_forward.1} parent=5 // pred_check_branch
      %212 = sbr.rel (%p209) target = $region40
    $region39: #{decoder2d_forward.1} parent=5 // pred_region
      %s213 = ssub.s32 %s11, 1
      %s214 = smul.u32 32, %s21
      %p215 = scmp.lt.s32.totalorder %s20, 1
      %s216 = scalar_select %p215, %s20, 1
      %p217 = scmp.lt.s32.totalorder %s214, 31
      %s218 = scalar_select %p217, %s214, 31
      %s219 = smul.addr %s216, 32
      %s220 = sadd.s32 %s218, %s219
      %s221 = smul.addr %s220, 4
      %s222 = scalar_lea.vmem %s0, %s221
      %p223 = pneg %p51
      %p224 = pneg %p48
      %p225 = pneg %p72
      %p226 = pneg %p69
      %p227 = pneg %p93
      %p228 = pneg %p90
      %p229 = pneg %p114
      %p230 = pneg %p111
      %p231 = pneg %p135
      %p232 = pneg %p132
      %p233 = pneg %p163
      %p234 = pneg %p160
      %s235 = smul.u32 2, %s21
      %p236 = scmp.lt.s32.totalorder %s20, 1
      %s237 = scalar_select %p236, %s20, 1
      %p238 = scmp.lt.s32.totalorder %s235, 1
      %s239 = scalar_select %p238, %s235, 1
      %s240 = smul.addr %s237, 4
      %s241 = sadd.s32 %s239, %s240
      %s242 = smul.addr %s241, 8
      %s243 = scalar_lea.vmem %s5, %s242
      %s244 = smul.u32 32, %s21
      %p245 = scmp.lt.s32.totalorder %s20, 1
      %s246 = scalar_select %p245, %s20, 1
      %p247 = scmp.lt.s32.totalorder %s244, 31
      %s248 = scalar_select %p247, %s244, 31
      %s249 = smul.addr %s246, 32
      %s250 = sadd.s32 %s248, %s249
      %s251 = smul.addr %s250, 4
      %s252 = scalar_lea.vmem %s0, %s251
      %s253 = smul.u32 32, %s21
      %s254 = smul.u32 2, %s21
      %p255 = scmp.lt.s32.totalorder %s20, 1
      %s256 = scalar_select %p255, %s20, 1
      %p257 = scmp.lt.s32.totalorder %s254, 1
      %s258 = scalar_select %p257, %s254, 1
      %s259 = smul.addr %s256, 4
      %s260 = sadd.s32 %s258, %s259
      %s261 = smul.addr %s260, 8
      %s262 = scalar_lea.vmem %s5, %s261
      %s263 = smul.u32 2, %s21
      %v265 = vld [vmem:[%s252] sm:$0xf]
      %v266 = vld [vmem:[%s252 + $0x4] sm:$0xf]
      %v267 = vld [vmem:[%s252 + $0x8] sm:$0xf]
      %v268 = vld [vmem:[%s252 + $0xc] sm:$0xf]
      %v269 = vld [vmem:[%s252 + $0x10] sm:$0xf]
      %v270 = vld [vmem:[%s252 + $0x14] sm:$0xf]
      %v271 = vld [vmem:[%s252 + $0x18] sm:$0xf]
      %v272 = vld [vmem:[%s252 + $0x1c] sm:$0xf]
      %v273 = vld [vmem:[%s252 + $0x20] sm:$0xf]
      %v274 = vld [vmem:[%s252 + $0x24] sm:$0xf]
      %v275 = vld [vmem:[%s252 + $0x28] sm:$0xf]
      %v276 = vld [vmem:[%s252 + $0x2c] sm:$0xf]
      %v277 = vld [vmem:[%s252 + $0x30] sm:$0xf]
      %v278 = vld [vmem:[%s252 + $0x34] sm:$0xf]
      %v279 = vld [vmem:[%s252 + $0x38] sm:$0xf]
      %v280 = vld [vmem:[%s252 + $0x3c] sm:$0xf]
      %v281 = vld [vmem:[%s252 + $0x40] sm:$0xf]
      %v282 = vld [vmem:[%s252 + $0x44] sm:$0xf]
      %v283 = vld [vmem:[%s252 + $0x48] sm:$0xf]
      %v284 = vld [vmem:[%s252 + $0x4c] sm:$0xf]
      %v285 = vld [vmem:[%s252 + $0x50] sm:$0xf]
      %v286 = vld [vmem:[%s252 + $0x54] sm:$0xf]
      %v287 = vld [vmem:[%s252 + $0x58] sm:$0xf]
      %v288 = vld [vmem:[%s252 + $0x5c] sm:$0xf]
      %v289 = vld [vmem:[%s252 + $0x60] sm:$0xf]
      %v290 = vld [vmem:[%s252 + $0x64] sm:$0xf]
      %v291 = vld [vmem:[%s252 + $0x68] sm:$0xf]
      %v292 = vld [vmem:[%s252 + $0x6c] sm:$0xf]
      %v293 = vld [vmem:[%s252 + $0x70] sm:$0xf]
      %v294 = vld [vmem:[%s252 + $0x74] sm:$0xf]
      %v295 = vld [vmem:[%s252 + $0x78] sm:$0xf]
      %v296 = vld [vmem:[%s252 + $0x7c] sm:$0xf]
      %v297 = vld [vmem:[%s1] sm:$0xf]
      %v298 = vld [vmem:[%s1 + $0x4] sm:$0xf]
      %v299 = vld [vmem:[%s1 + $0x8] sm:$0xf]
      %v300 = vld [vmem:[%s1 + $0xc] sm:$0xf]
      %v301 = vld [vmem:[%s1 + $0x10] sm:$0x3]
      %v302 = vld [vmem:[%s2] sm:$0x1]
      %v304 = vperm.slane %v302, 0
      %v338 = vunpack.c.l.b16 %v265
      %v339 = vunpack.c.l.b16 %v266
      %v340 = vunpack.c.l.b16 %v267
      %v341 = vunpack.c.l.b16 %v268
      %v342 = vunpack.c.l.b16 %v269
      %v343 = vunpack.c.l.b16 %v270
      %v344 = vunpack.c.l.b16 %v271
      %v345 = vunpack.c.l.b16 %v272
      %v346 = vunpack.c.l.b16 %v273
      %v347 = vunpack.c.l.b16 %v274
      %v348 = vunpack.c.l.b16 %v275
      %v349 = vunpack.c.l.b16 %v276
      %v350 = vunpack.c.l.b16 %v277
      %v351 = vunpack.c.l.b16 %v278
      %v352 = vunpack.c.l.b16 %v279
      %v353 = vunpack.c.l.b16 %v280
      %v354 = vunpack.c.l.b16 %v281
      %v355 = vunpack.c.l.b16 %v282
      %v356 = vunpack.c.l.b16 %v283
      %v357 = vunpack.c.l.b16 %v284
      %v358 = vunpack.c.l.b16 %v285
      %v359 = vunpack.c.l.b16 %v286
      %v360 = vunpack.c.l.b16 %v287
      %v361 = vunpack.c.l.b16 %v288
      %v362 = vunpack.c.l.b16 %v289
      %v363 = vunpack.c.l.b16 %v290
      %v364 = vunpack.c.l.b16 %v291
      %v365 = vunpack.c.l.b16 %v292
      %v366 = vunpack.c.l.b16 %v293
      %v367 = vunpack.c.l.b16 %v294
      %v368 = vunpack.c.l.b16 %v295
      %v369 = vunpack.c.l.b16 %v296
      %v370 = vpack.c.b16 %v339, %v338
      %v371 = vpack.c.b16 %v341, %v340
      %v372 = vpack.c.b16 %v343, %v342
      %v373 = vpack.c.b16 %v345, %v344
      %v374 = vpack.c.b16 %v347, %v346
      %v375 = vpack.c.b16 %v349, %v348
      %v376 = vpack.c.b16 %v351, %v350
      %v377 = vpack.c.b16 %v353, %v352
      %v378 = vpack.c.b16 %v355, %v354
      %v379 = vpack.c.b16 %v357, %v356
      %v380 = vpack.c.b16 %v359, %v358
      %v381 = vpack.c.b16 %v361, %v360
      %v382 = vpack.c.b16 %v363, %v362
      %v383 = vpack.c.b16 %v365, %v364
      %v384 = vpack.c.b16 %v367, %v366
      %v385 = vpack.c.b16 %v369, %v368
      %v391 = vunpack.c.l.b16 %v297
      %v392 = vunpack.c.l.b16 %v298
      %v393 = vunpack.c.l.b16 %v299
      %v394 = vunpack.c.l.b16 %v300
      %v395 = vunpack.c.l.b16 %v301
      %v396 = vpack.c.b16 %v392, %v391
      %v397 = vpack.c.b16 %v394, %v393
      %v398 = vpack.c.b16 %v395, %v395
      %vm401 = vcmask 293888
      %v403 = vsel %vm401, %v370, 0
      %v406 = vsel %vm401, %v371, 0
      %v409 = vsel %vm401, %v372, 0
      %v412 = vsel %vm401, %v373, 0
      %v415 = vsel %vm401, %v374, 0
      %v418 = vsel %vm401, %v375, 0
      %v421 = vsel %vm401, %v376, 0
      %v424 = vsel %vm401, %v377, 0
      %v427 = vsel %vm401, %v378, 0
      %v430 = vsel %vm401, %v379, 0
      %v433 = vsel %vm401, %v380, 0
      %v436 = vsel %vm401, %v381, 0
      %v439 = vsel %vm401, %v382, 0
      %v442 = vsel %vm401, %v383, 0
      %v445 = vsel %vm401, %v384, 0
      %v448 = vsel %vm401, %v385, 0
      %vm450 = vcmask 1041408
      %v452 = vsel %vm450, %v398, 0
      %454 = vmatpush.bf16.msra.mxu0 0
      %455 = vmatpush.bf16.msra.mxu0 0
      %456 = vmatpush.bf16.msra.mxu0 0
      %457 = vmatpush.bf16.msra.mxu0 0
      %458 = vmatpush.bf16.msra.mxu0 0
      %459 = vmatpush.bf16.msra.mxu0 %v452
      %460 = vmatpush.bf16.msra.mxu0 %v397
      %461 = vmatpush.bf16.msra.mxu0 %v396
      %462 = vmatmul.bf16.gmra.mxu0 %v403
      %v463 = vpop.f32.mrf.mxu0
      %v464 = vadd.f32 %v304, %v463
      %v465 = vpop.f32.mrf.mxu0
      %v466 = vadd.f32 %v304, %v465
      %467 = vmatmul.bf16.gmra.mxu0 %v406
      %v468 = vpop.f32.mrf.mxu0
      %v469 = vadd.f32 %v304, %v468
      %v470 = vpop.f32.mrf.mxu0
      %v471 = vadd.f32 %v304, %v470
      %472 = vmatmul.bf16.gmra.mxu0 %v409
      %v473 = vpop.f32.mrf.mxu0
      %v474 = vadd.f32 %v304, %v473
      %v475 = vpop.f32.mrf.mxu0
      %v476 = vadd.f32 %v304, %v475
      %477 = vmatmul.bf16.gmra.mxu0 %v412
      %v478 = vpop.f32.mrf.mxu0
      %v479 = vadd.f32 %v304, %v478
      %v480 = vpop.f32.mrf.mxu0
      %v481 = vadd.f32 %v304, %v480
      %482 = vmatmul.bf16.gmra.mxu0 %v415
      %v483 = vpop.f32.mrf.mxu0
      %v484 = vadd.f32 %v304, %v483
      %v485 = vpop.f32.mrf.mxu0
      %v486 = vadd.f32 %v304, %v485
      %487 = vmatmul.bf16.gmra.mxu0 %v418
      %v488 = vpop.f32.mrf.mxu0
      %v489 = vadd.f32 %v304, %v488
      %v490 = vpop.f32.mrf.mxu0
      %v491 = vadd.f32 %v304, %v490
      %492 = vmatmul.bf16.gmra.mxu0 %v421
      %v493 = vpop.f32.mrf.mxu0
      %v494 = vadd.f32 %v304, %v493
      %v495 = vpop.f32.mrf.mxu0
      %v496 = vadd.f32 %v304, %v495
      %497 = vmatmul.bf16.gmra.mxu0 %v424
      %v498 = vpop.f32.mrf.mxu0
      %v499 = vadd.f32 %v304, %v498
      %v500 = vpop.f32.mrf.mxu0
      %v501 = vadd.f32 %v304, %v500
      %502 = vmatmul.bf16.gmra.mxu0 %v427
      %v503 = vpop.f32.mrf.mxu0
      %v504 = vadd.f32 %v304, %v503
      %v505 = vpop.f32.mrf.mxu0
      %v506 = vadd.f32 %v304, %v505
      %507 = vmatmul.bf16.gmra.mxu0 %v430
      %v508 = vpop.f32.mrf.mxu0
      %v509 = vadd.f32 %v304, %v508
      %v510 = vpop.f32.mrf.mxu0
      %v511 = vadd.f32 %v304, %v510
      %512 = vmatmul.bf16.gmra.mxu0 %v433
      %v513 = vpop.f32.mrf.mxu0
      %v514 = vadd.f32 %v304, %v513
      %v515 = vpop.f32.mrf.mxu0
      %v516 = vadd.f32 %v304, %v515
      %517 = vmatmul.bf16.gmra.mxu0 %v436
      %v518 = vpop.f32.mrf.mxu0
      %v519 = vadd.f32 %v304, %v518
      %v520 = vpop.f32.mrf.mxu0
      %v521 = vadd.f32 %v304, %v520
      %522 = vmatmul.bf16.gmra.mxu0 %v439
      %v523 = vpop.f32.mrf.mxu0
      %v524 = vadd.f32 %v304, %v523
      %v525 = vpop.f32.mrf.mxu0
      %v526 = vadd.f32 %v304, %v525
      %527 = vmatmul.bf16.gmra.mxu0 %v442
      %v528 = vpop.f32.mrf.mxu0
      %v529 = vadd.f32 %v304, %v528
      %v530 = vpop.f32.mrf.mxu0
      %v531 = vadd.f32 %v304, %v530
      %532 = vmatmul.bf16.gmra.mxu0 %v445
      %v533 = vpop.f32.mrf.mxu0
      %v534 = vadd.f32 %v304, %v533
      %v535 = vpop.f32.mrf.mxu0
      %v536 = vadd.f32 %v304, %v535
      %537 = vmatmul.bf16.gmra.mxu0 %v448
      %v538 = vpop.f32.mrf.mxu0
      %v539 = vadd.f32 %v304, %v538
      %v540 = vpop.f32.mrf.mxu0
      %v541 = vadd.f32 %v304, %v540
      %542 = vdwg.mxu0
      %v543 = vmax.f32 %v464, 0.0
      %v544 = vmax.f32 %v466, 0.0
      %v545 = vmax.f32 %v469, 0.0
      %v546 = vmax.f32 %v471, 0.0
      %v547 = vmax.f32 %v474, 0.0
      %v548 = vmax.f32 %v476, 0.0
      %v549 = vmax.f32 %v479, 0.0
      %v550 = vmax.f32 %v481, 0.0
      %v551 = vmax.f32 %v484, 0.0
      %v552 = vmax.f32 %v486, 0.0
      %v553 = vmax.f32 %v489, 0.0
      %v554 = vmax.f32 %v491, 0.0
      %v555 = vmax.f32 %v494, 0.0
      %v556 = vmax.f32 %v496, 0.0
      %v557 = vmax.f32 %v499, 0.0
      %v558 = vmax.f32 %v501, 0.0
      %v559 = vmax.f32 %v504, 0.0
      %v560 = vmax.f32 %v506, 0.0
      %v561 = vmax.f32 %v509, 0.0
      %v562 = vmax.f32 %v511, 0.0
      %v563 = vmax.f32 %v514, 0.0
      %v564 = vmax.f32 %v516, 0.0
      %v565 = vmax.f32 %v519, 0.0
      %v566 = vmax.f32 %v521, 0.0
      %v567 = vmax.f32 %v524, 0.0
      %v568 = vmax.f32 %v526, 0.0
      %v569 = vmax.f32 %v529, 0.0
      %v570 = vmax.f32 %v531, 0.0
      %v571 = vmax.f32 %v534, 0.0
      %v572 = vmax.f32 %v536, 0.0
      %v573 = vmax.f32 %v539, 0.0
      %v574 = vmax.f32 %v541, 0.0
      %v575 = vpack.c.bf16 %v544, %v543
      %v576 = vpack.c.bf16 %v546, %v545
      %v577 = vpack.c.bf16 %v548, %v547
      %v578 = vpack.c.bf16 %v550, %v549
      %v579 = vpack.c.bf16 %v552, %v551
      %v580 = vpack.c.bf16 %v554, %v553
      %v581 = vpack.c.bf16 %v556, %v555
      %v582 = vpack.c.bf16 %v558, %v557
      %v583 = vpack.c.bf16 %v560, %v559
      %v584 = vpack.c.bf16 %v562, %v561
      %v585 = vpack.c.bf16 %v564, %v563
      %v586 = vpack.c.bf16 %v566, %v565
      %v587 = vpack.c.bf16 %v568, %v567
      %v588 = vpack.c.bf16 %v570, %v569
      %v589 = vpack.c.bf16 %v572, %v571
      %v590 = vpack.c.bf16 %v574, %v573
      %v591 = vld [vmem:[%s3] sm:$0xf]
      %v592 = vld [vmem:[%s3 + $0x4] sm:$0xf]
      %v593 = vld [vmem:[%s4] sm:$0xff]
      %v594 = vld [vmem:[%s4 + $0x8] sm:$0xff]
      %596 = vset.pattern.permute.xlu0 0
      %597 = vperm.xlu0 %596, %v593
      %v598 = vpop.permute.xlu0 %597
      %601 = vset.pattern.permute.xlu0 0
      %602 = vperm.xlu0 %601, %v594
      %v603 = vpop.permute.xlu0 %602
      %v607 = vunpack.c.l.b16 %v591
      %v608 = vunpack.c.l.b16 %v592
      %v609 = vpack.c.b16 %v608, %v607
      %vm610 = vcmask 523264
      %v612 = vsel %vm610, %v609, 0
      %v615 = vsel %vm610, %v575, 0
      %v618 = vsel %vm610, %v576, 0
      %v621 = vsel %vm610, %v577, 0
      %v624 = vsel %vm610, %v578, 0
      %v627 = vsel %vm610, %v579, 0
      %v630 = vsel %vm610, %v580, 0
      %v633 = vsel %vm610, %v581, 0
      %v636 = vsel %vm610, %v582, 0
      %v639 = vsel %vm610, %v583, 0
      %v642 = vsel %vm610, %v584, 0
      %v645 = vsel %vm610, %v585, 0
      %v648 = vsel %vm610, %v586, 0
      %v651 = vsel %vm610, %v587, 0
      %v654 = vsel %vm610, %v588, 0
      %v657 = vsel %vm610, %v589, 0
      %v660 = vsel %vm610, %v590, 0
      %662 = vmatpush.bf16.xpose.msra.mxu0 %v636
      %663 = vmatpush.bf16.xpose.msra.mxu0 %v633
      %664 = vmatpush.bf16.xpose.msra.mxu0 %v630
      %665 = vmatpush.bf16.xpose.msra.mxu0 %v627
      %666 = vmatpush.bf16.xpose.msra.mxu0 %v624
      %667 = vmatpush.bf16.xpose.msra.mxu0 %v621
      %668 = vmatpush.bf16.xpose.msra.mxu0 %v618
      %669 = vmatpush.bf16.xpose.msra.mxu0 %v615
      %670 = vmatmul.bf16.gmra.mxu0 %v612
      %v671 = vpop.f32.mrf.mxu0
      %v672 = vadd.f32 %v598, %v671
      %v673 = vpop.f32.mrf.mxu0
      %v674 = vadd.f32 %v603, %v673
      %675 = vdwg.mxu0
      %676 = vmatpush.bf16.xpose.msra.mxu0 %v660
      %677 = vmatpush.bf16.xpose.msra.mxu0 %v657
      %678 = vmatpush.bf16.xpose.msra.mxu0 %v654
      %679 = vmatpush.bf16.xpose.msra.mxu0 %v651
      %680 = vmatpush.bf16.xpose.msra.mxu0 %v648
      %681 = vmatpush.bf16.xpose.msra.mxu0 %v645
      %682 = vmatpush.bf16.xpose.msra.mxu0 %v642
      %683 = vmatpush.bf16.xpose.msra.mxu0 %v639
      %684 = vmatmul.bf16.gmra.mxu0 %v612
      %v685 = vpop.f32.mrf.mxu0
      %v686 = vadd.f32 %v598, %v685
      %v687 = vpop.f32.mrf.mxu0
      %v688 = vadd.f32 %v603, %v687
      %689 = vdwg.mxu0
      %690 = vst [vmem:[%s262] sm:$0xff] %v672
      %691 = vst [vmem:[%s262 + $0x8] sm:$0xff] %v686
      %692 = vst [vmem:[%s262 + $0x10] sm:$0xff] %v674
      %693 = vst [vmem:[%s262 + $0x18] sm:$0xff] %v688
      %s694 = smul.u32 2, %s21
      %p695 = scmp.lt.s32.totalorder %s20, 1
      %s696 = scalar_select %p695, %s20, 1
      %p697 = scmp.lt.s32.totalorder %s694, 1
      %s698 = scalar_select %p697, %s694, 1
      %s699 = smul.addr %s696, 4
      %s700 = sadd.s32 %s698, %s699
      %s701 = smul.addr %s700, 8
      %s702 = scalar_lea.vmem %s5, %s701
      // Predicated region
      $region41: #{decoder2d_forward.1} parent=39 // pred_check
        %p703 = pneg %p160
      $region42: #{decoder2d_forward.1} parent=39 // pred_check_branch
        %705 = sbr.rel (%p703) target = $region44
      $region43: #{decoder2d_forward.1} parent=39 // pred_region
        %s706 = smul.u32 2, %s21
      $region44: #{decoder2d_forward.1} parent=39 // pred_fallthru
        _
    $region40: #{decoder2d_forward.1} parent=5 // pred_fallthru
      _
    %p707 = scmp.le.s32.totalorder 2, %s11
    // Predicated region
    $region45: #{decoder2d_forward.1} parent=5 // pred_check
      %p708 = pneg %p707
    $region46: #{decoder2d_forward.1} parent=5 // pred_check_branch
      %710 = sbr.rel (%p708) target = $region48
    $region47: #{decoder2d_forward.1} parent=5 // pred_region
      %s711 = ssub.s32 %s11, 2
      // Predicated region
      $region49: #{decoder2d_forward.1} parent=47 // pred_check
        %p712 = pneg %p166
      $region50: #{decoder2d_forward.1} parent=47 // pred_check_branch
        %714 = sbr.rel (%p712) target = $region52
      $region51: #{decoder2d_forward.1} parent=47 // pred_region
        %s715 = smul.u32 2, %s23
        %p716 = scmp.lt.s32.totalorder %s22, 1
        %s717 = scalar_select %p716, %s22, 1
        %p718 = scmp.lt.s32.totalorder %s715, 1
        %s719 = scalar_select %p718, %s715, 1
        %s720 = smul.addr %s717, 4
        %s721 = sadd.s32 %s719, %s720
        %s722 = smul.addr %s721, 8
        %s723 = scalar_lea.vmem %s5, %s722
      $region52: #{decoder2d_forward.1} parent=47 // pred_fallthru
        _
    $region48: #{decoder2d_forward.1} parent=5 // pred_fallthru
      _
  $region6: #{decoder2d_forward.1} parent=0 // loop_footer
    %s15 = sadd.s32 1, %s11
  $region7: #{decoder2d_forward.1} parent=0 // loop_footer_branch
    %10 = sbr.rel target = $region3
  $region8: #{decoder2d_forward.1} parent=0 // loop_exit
    _

</llo_original>
